<compile_context>
chip_gen: v7x
topology: tpu7x:2x2x1
jax: 0.10.0
libtpu: 0.0.40
codegen_flags: <defaults>
</compile_context>

<pallas_src>
import functools

import jax
import jax.numpy as jnp
from jax.experimental import pallas as pl
from jax.experimental.pallas import tpu as pltpu


def _round_up(x, m):
    return (x + m - 1) // m * m


def _vmem_plan():
    """Per-chip (scoped-limit, tiling-budget) in bytes."""
    try:
        phys = int(pltpu.get_tpu_info().vmem_capacity_bytes)
    except Exception:
        phys = 64 * 1024 * 1024                      # conservative (v7x per-core VMEM)
    vmem_limit = min(phys * 3 // 4, 96 * 1024 * 1024)   # v7x: 48 MiB, v5e/v6e: 96 MiB
    budget = min(phys // 2, 64 * 1024 * 1024)            # v7x: 32 MiB, v5e/v6e: 64 MiB
    return vmem_limit, budget


def _step_bytes(dims_pad, t, x_itemsize, op_itemsize):
    """Per-grid-step VMEM footprint for one chunk of layers at L-tile size t."""
    n = len(dims_pad) - 1
    # double-buffered x / out tiles
    io = 2 * dims_pad[0] * t * x_itemsize + 2 * dims_pad[-1] * t * x_itemsize
    # resident params (weights in op dtype, bias f32 column); default pipeline
    # keeps 2 buffers per input even for constant index_maps -> count 2x.
    params = sum(dims_pad[i + 1] * dims_pad[i] * op_itemsize + dims_pad[i + 1] * 4
                 for i in range(n))
    # live f32 intermediates: only h (layer input) and acc (layer output) at once
    live = max((dims_pad[i] + dims_pad[i + 1]) * t * 4 for i in range(n))
    return io + 2 * params + live


def _mlp_conv_kernel(x_ref, *rest, n_layers, relu_after_last):
    """rest = (w1, b1, w2, b2, ..., wn, bn, out_ref).

    x_ref:   (1, C0_pad, TL)        -- one batch element, one L tile
    w_i:     (C{i}_pad, C{i-1}_pad) -- PyTorch Conv1d weight (out, in), op dtype
    b_i:     (C{i}_pad, 1)          -- f32
    out_ref: (1, Cn_pad, TL)
    """
    out_ref = rest[-1]
    params = rest[:-1]
    op_dtype = params[0].dtype                       # operand/compute dtype = weight dtype

    h = x_ref[0].astype(op_dtype)                    # (C0_pad, TL)
    for i in range(n_layers):
        w = params[2 * i][...]                       # (C_out_pad, C_in_pad)
        b = params[2 * i + 1][...]                   # (C_out_pad, 1), f32
        acc = jnp.dot(w, h, preferred_element_type=jnp.float32) + b
        last = i == n_layers - 1
        if (not last) or relu_after_last:
            acc = jnp.maximum(acc, 0.0)
        h = acc if last else acc.astype(op_dtype)
    out_ref[0] = h.astype(out_ref.dtype)


def _mlp_conv_chunk(x_ncl, weights, biases, *, relu_after_last, tl_cap,
                    budget, vmem_limit, compute_dtype):
    """One pallas_call over a chunk of layers whose params fit VMEM."""
    N, C_in, L = x_ncl.shape
    out_dtype = x_ncl.dtype
    x_itemsize = jnp.dtype(x_ncl.dtype).itemsize
    op_dtype = jnp.dtype(compute_dtype)
    op_itemsize = op_dtype.itemsize
    n_layers = len(weights)

    # Channel dims padded only to the sublane multiple (8 f32 / 16 bf16).
    sub = max(8, 32 // op_itemsize)
    dims = [C_in] + [w.shape[0] for w in weights]
    dims_pad = [_round_up(d, sub) for d in dims]
    c_out, c_out_pad = dims[-1], dims_pad[-1]

    # --- L tiling: lane axis, 128-aligned; pick the largest tile within the
    #     VMEM budget that divides round_up(L, 128) (no extra padding tax). ---
    l_pad = _round_up(L, 128)
    tl = max(128, min(_round_up(tl_cap, 128), l_pad))
    while tl > 128 and (l_pad % tl != 0
                        or _step_bytes(dims_pad, tl, x_itemsize, op_itemsize) > budget):
        tl -= 128
    n_l_tiles = l_pad // tl

    # --- Zero-pad input / params (padded channels stay exactly zero). ---
    x_pad = jnp.pad(x_ncl, ((0, 0), (0, dims_pad[0] - C_in), (0, l_pad - L)))

    # Larger-extent grid axis first so megacore / 2-TC chips split the busy axis.
    l_major = n_l_tiles >= N
    if l_major:
        grid = (n_l_tiles, N)
        xo_map = lambda l, n: (n, 0, l)
    else:
        grid = (N, n_l_tiles)
        xo_map = lambda n, l: (n, 0, l)
    const_map = lambda i, j: (0, 0)                  # resident across grid steps

    args = [x_pad]
    in_specs = [pl.BlockSpec((1, dims_pad[0], tl), xo_map)]
    for i, (w, b) in enumerate(zip(weights, biases)):
        c_o, c_i = dims[i + 1], dims[i]
        c_o_p, c_i_p = dims_pad[i + 1], dims_pad[i]
        w_pad = jnp.pad(w, ((0, c_o_p - c_o), (0, c_i_p - c_i))).astype(op_dtype)
        b_pad = jnp.pad(b, (0, c_o_p - c_o)).astype(jnp.float32).reshape(c_o_p, 1)
        args += [w_pad, b_pad]
        in_specs += [pl.BlockSpec(w_pad.shape, const_map),
                     pl.BlockSpec(b_pad.shape, const_map)]

    param_bytes = sum(dims_pad[i + 1] * dims_pad[i] * op_itemsize + dims_pad[i + 1] * 4
                      for i in range(n_layers))
    flops = 2 * N * l_pad * sum(dims_pad[i] * dims_pad[i + 1] for i in range(n_layers))
    bytes_accessed = (x_pad.size * x_itemsize
                      + N * c_out_pad * l_pad * x_itemsize
                      + param_bytes)

    kernel = functools.partial(_mlp_conv_kernel, n_layers=n_layers,
                               relu_after_last=relu_after_last)
    out_pad = pl.pallas_call(
        kernel,
        out_shape=jax.ShapeDtypeStruct((N, c_out_pad, l_pad), out_dtype),
        grid=grid,
        in_specs=in_specs,
        out_specs=pl.BlockSpec((1, c_out_pad, tl), xo_map),
        compiler_params=pltpu.CompilerParams(
            dimension_semantics=("parallel", "parallel"),
            vmem_limit_bytes=vmem_limit),
        cost_estimate=pl.CostEstimate(
            flops=flops, transcendentals=0, bytes_accessed=bytes_accessed),
    )(*args)

    # Slice padded channels / length back off.
    return out_pad[:, :c_out, :L]


def mlp_conv(x_ncl, weights, biases, *, tl=None, compute_dtype=None):
    """MLPConv forward pass.

    x_ncl:   (N, C_in, L)              -- PyTorch Conv1d layout (kept, no transposes)
    weights: list of (C_out_i, C_in_i) -- PyTorch Conv1d weight, kernel dim squeezed
    biases:  list of (C_out_i,)
    compute_dtype: optional operand dtype for the matmuls (e.g. jnp.bfloat16 for
                   an inference-style speedup on v6e/v7x); accumulation stays f32.
    returns: (N, C_out_last, L)
    """
    assert len(weights) == len(biases) and len(weights) >= 1
    compute_dtype = jnp.dtype(x_ncl.dtype if compute_dtype is None else compute_dtype)
    x_itemsize = jnp.dtype(x_ncl.dtype).itemsize
    op_itemsize = compute_dtype.itemsize
    sub = max(8, 32 // op_itemsize)

    vmem_limit, budget = _vmem_plan()
    tl_cap = 2048 if tl is None else tl

    # Greedily split the layer stack into chunks whose resident params
    # (+ minimal 128-wide tiles) fit the VMEM budget.  Chunk boundaries carry
    # the ReLU so the composition matches the original module exactly.
    n_layers = len(weights)
    h = x_ncl
    lo = 0
    while lo < n_layers:
        dims = [h.shape[1], weights[lo].shape[0]]
        dp = [_round_up(d, sub) for d in dims]
        if _step_bytes(dp, 128, x_itemsize, op_itemsize) > budget:
            # TODO(synk): output-channel-tiled path for single layers whose
            # weights alone exceed the VMEM budget.
            raise ValueError("MLPConv layer too large to keep weights resident in VMEM")
        hi = lo + 1
        while hi < n_layers:
            nd = dims + [weights[hi].shape[0]]
            ndp = [_round_up(d, sub) for d in nd]
            if _step_bytes(ndp, 128, x_itemsize, op_itemsize) > budget:
                break
            dims = nd
            hi += 1
        h = _mlp_conv_chunk(h, weights[lo:hi], biases[lo:hi],
                            relu_after_last=(hi < n_layers),
                            tl_cap=tl_cap, budget=budget,
                            vmem_limit=vmem_limit, compute_dtype=compute_dtype)
        lo = hi
    return h


def _init_params(dims, key):
    """Deterministic init matching nn.Conv1d(kernel_size=1) shapes."""
    weights, biases = [], []
    for i in range(len(dims) - 1):
        c_in, c_out = dims[i], dims[i + 1]
        kw, kb = jax.random.split(jax.random.fold_in(key, i))
        bound = 1.0 / jnp.sqrt(c_in)
        # PyTorch Conv1d weight is (C_out, C_in, 1); stored squeezed as (C_out, C_in).
        w = jax.random.uniform(kw, (c_out, c_in), jnp.float32, -bound, bound)
        b = jax.random.uniform(kb, (c_out,), jnp.float32, -bound, bound)
        weights.append(w)
        biases.append(b)
    return weights, biases


def _reference(x_ncl, weights, biases):
    """Pure-JAX reference of the PyTorch forward pass (NCL layout)."""
    h = x_ncl.astype(jnp.float32)
    n_layers = len(weights)
    for i, (w, b) in enumerate(zip(weights, biases)):
        h = jnp.einsum("oi,nil->nol", w.astype(jnp.float32), h) + b[None, :, None]
        if i != n_layers - 1:
            h = jnp.maximum(h, 0.0)
    return h.astype(x_ncl.dtype)


if __name__ == "__main__":
    key = jax.random.PRNGKey(0)
    dims = [4, 32, 64, 8]          # MLPConv(dims)
    N, L = 2, 16                   # input: (batch, dims[0], length)

    kx, kp = jax.random.split(key)
    x = jax.random.normal(kx, (N, dims[0], L), jnp.float32)
    weights, biases = _init_params(dims, kp)

    out = jax.block_until_ready(mlp_conv(x, weights, biases))
    ref = _reference(x, weights, biases)

    assert out.shape == (N, dims[-1], L), out.shape
    assert jnp.allclose(out, ref, atol=1e-5, rtol=1e-5), "mismatch vs reference"

    print("KERNEL_OK")
</pallas_src>

<mosaic_0001>
module attributes {stable_mosaic.version = 11 : i64} {
  func.func @_mlp_conv_kernel(%arg0: i32, %arg1: i32, %arg2: memref<1x8x128xf32, #tpu.memory_space<vmem>>, %arg3: memref<32x8xf32, #tpu.memory_space<vmem>>, %arg4: memref<32x1xf32, #tpu.memory_space<vmem>>, %arg5: memref<64x32xf32, #tpu.memory_space<vmem>>, %arg6: memref<64x1xf32, #tpu.memory_space<vmem>>, %arg7: memref<8x64xf32, #tpu.memory_space<vmem>>, %arg8: memref<8x1xf32, #tpu.memory_space<vmem>>, %arg9: memref<1x8x128xf32, #tpu.memory_space<vmem>>) attributes {dimension_semantics = [#tpu.dimension_semantics<parallel>, #tpu.dimension_semantics<parallel>], iteration_bounds = array<i64: 2, 1>, scalar_prefetch = 0 : i64, scratch_operands = 0 : i64, tpu.core_type = #tpu.core_type<tc>, window_params = [{transform_indices = @transform_0, window_bounds = array<i64: 1, 8, 128>}, {pipeline_mode = #tpu.pipeline_mode<synchronous>, transform_indices = @transform_1, window_bounds = array<i64: 32, 8>}, {pipeline_mode = #tpu.pipeline_mode<synchronous>, transform_indices = @transform_2, window_bounds = array<i64: 32, 1>}, {pipeline_mode = #tpu.pipeline_mode<synchronous>, transform_indices = @transform_3, window_bounds = array<i64: 64, 32>}, {pipeline_mode = #tpu.pipeline_mode<synchronous>, transform_indices = @transform_4, window_bounds = array<i64: 64, 1>}, {pipeline_mode = #tpu.pipeline_mode<synchronous>, transform_indices = @transform_5, window_bounds = array<i64: 8, 64>}, {pipeline_mode = #tpu.pipeline_mode<synchronous>, transform_indices = @transform_6, window_bounds = array<i64: 8, 1>}, {transform_indices = @transform_7, window_bounds = array<i64: 1, 8, 128>}]} {
    %c0 = arith.constant 0 : index
    %c0_0 = arith.constant 0 : index
    %c0_1 = arith.constant 0 : index
    %0 = vector.load %arg2[%c0, %c0_0, %c0_1] : memref<1x8x128xf32, #tpu.memory_space<vmem>>, vector<1x8x128xf32>
    %1 = vector.shape_cast %0 : vector<1x8x128xf32> to vector<8x128xf32>
    %c0_2 = arith.constant 0 : index
    %c0_3 = arith.constant 0 : index
    %2 = vector.load %arg3[%c0_2, %c0_3] : memref<32x8xf32, #tpu.memory_space<vmem>>, vector<32x8xf32>
    %c0_4 = arith.constant 0 : index
    %c0_5 = arith.constant 0 : index
    %3 = vector.load %arg4[%c0_4, %c0_5] : memref<32x1xf32, #tpu.memory_space<vmem>>, vector<32x1xf32>
    %cst = arith.constant dense<0.000000e+00> : vector<32x128xf32>
    %4 = tpu.matmul %2, %1, %cst {dimension_numbers = #tpu.dot_dimension_numbers<[1], [0], [0], [1], [0, 0, 1, 1], [], []>} : vector<32x8xf32>, vector<8x128xf32>, vector<32x128xf32> -> vector<32x128xf32>
    %5 = vector.broadcast %3 : vector<32x1xf32> to vector<32x128xf32>
    %6 = arith.addf %4, %5 : vector<32x128xf32>
    %cst_6 = arith.constant 0.000000e+00 : f32
    %7 = vector.broadcast %cst_6 : f32 to vector<32x128xf32>
    %8 = arith.maximumf %6, %7 : vector<32x128xf32>
    %c0_7 = arith.constant 0 : index
    %c0_8 = arith.constant 0 : index
    %9 = vector.load %arg5[%c0_7, %c0_8] : memref<64x32xf32, #tpu.memory_space<vmem>>, vector<64x32xf32>
    %c0_9 = arith.constant 0 : index
    %c0_10 = arith.constant 0 : index
    %10 = vector.load %arg6[%c0_9, %c0_10] : memref<64x1xf32, #tpu.memory_space<vmem>>, vector<64x1xf32>
    %cst_11 = arith.constant dense<0.000000e+00> : vector<64x128xf32>
    %11 = tpu.matmul %9, %8, %cst_11 {dimension_numbers = #tpu.dot_dimension_numbers<[1], [0], [0], [1], [0, 0, 1, 1], [], []>} : vector<64x32xf32>, vector<32x128xf32>, vector<64x128xf32> -> vector<64x128xf32>
    %12 = vector.broadcast %10 : vector<64x1xf32> to vector<64x128xf32>
    %13 = arith.addf %11, %12 : vector<64x128xf32>
    %cst_12 = arith.constant 0.000000e+00 : f32
    %14 = vector.broadcast %cst_12 : f32 to vector<64x128xf32>
    %15 = arith.maximumf %13, %14 : vector<64x128xf32>
    %c0_13 = arith.constant 0 : index
    %c0_14 = arith.constant 0 : index
    %16 = vector.load %arg7[%c0_13, %c0_14] : memref<8x64xf32, #tpu.memory_space<vmem>>, vector<8x64xf32>
    %c0_15 = arith.constant 0 : index
    %c0_16 = arith.constant 0 : index
    %17 = vector.load %arg8[%c0_15, %c0_16] : memref<8x1xf32, #tpu.memory_space<vmem>>, vector<8x1xf32>
    %cst_17 = arith.constant dense<0.000000e+00> : vector<8x128xf32>
    %18 = tpu.matmul %16, %15, %cst_17 {dimension_numbers = #tpu.dot_dimension_numbers<[1], [0], [0], [1], [0, 0, 1, 1], [], []>} : vector<8x64xf32>, vector<64x128xf32>, vector<8x128xf32> -> vector<8x128xf32>
    %19 = vector.broadcast %17 : vector<8x1xf32> to vector<8x128xf32>
    %20 = arith.addf %18, %19 : vector<8x128xf32>
    %c0_18 = arith.constant 0 : index
    %c0_19 = arith.constant 0 : index
    %c0_20 = arith.constant 0 : index
    %21 = vector.load %arg9[%c0_18, %c0_19, %c0_20] : memref<1x8x128xf32, #tpu.memory_space<vmem>>, vector<1x8x128xf32>
    %22 = vector.shape_cast %21 : vector<1x8x128xf32> to vector<8x128xf32>
    %23 = vector.shape_cast %20 : vector<8x128xf32> to vector<1x8x128xf32>
    tpu.vector_store %arg9[%c0_18, %c0_19, %c0_20], %23 {strides = array<i32>} : memref<1x8x128xf32, #tpu.memory_space<vmem>>, vector<1x8x128xf32>,
    return
  }
  func.func @transform_0(%arg0: i32, %arg1: i32) -> (i32, i32, i32) {
    %c0_i32 = arith.constant 0 : i32
    %c0_i32_0 = arith.constant 0 : i32
    return %arg0, %c0_i32, %arg1 : i32, i32, i32
  }
  func.func @transform_1(%arg0: i32, %arg1: i32) -> (i32, i32) {
    %c0_i32 = arith.constant 0 : i32
    %c0_i32_0 = arith.constant 0 : i32
    %c0_i32_1 = arith.constant 0 : i32
    return %c0_i32, %c0_i32_0 : i32, i32
  }
  func.func @transform_2(%arg0: i32, %arg1: i32) -> (i32, i32) {
    %c0_i32 = arith.constant 0 : i32
    %c0_i32_0 = arith.constant 0 : i32
    %c0_i32_1 = arith.constant 0 : i32
    return %c0_i32, %c0_i32_0 : i32, i32
  }
  func.func @transform_3(%arg0: i32, %arg1: i32) -> (i32, i32) {
    %c0_i32 = arith.constant 0 : i32
    %c0_i32_0 = arith.constant 0 : i32
    %c0_i32_1 = arith.constant 0 : i32
    return %c0_i32, %c0_i32_0 : i32, i32
  }
  func.func @transform_4(%arg0: i32, %arg1: i32) -> (i32, i32) {
    %c0_i32 = arith.constant 0 : i32
    %c0_i32_0 = arith.constant 0 : i32
    %c0_i32_1 = arith.constant 0 : i32
    return %c0_i32, %c0_i32_0 : i32, i32
  }
  func.func @transform_5(%arg0: i32, %arg1: i32) -> (i32, i32) {
    %c0_i32 = arith.constant 0 : i32
    %c0_i32_0 = arith.constant 0 : i32
    %c0_i32_1 = arith.constant 0 : i32
    return %c0_i32, %c0_i32_0 : i32, i32
  }
  func.func @transform_6(%arg0: i32, %arg1: i32) -> (i32, i32) {
    %c0_i32 = arith.constant 0 : i32
    %c0_i32_0 = arith.constant 0 : i32
    %c0_i32_1 = arith.constant 0 : i32
    return %c0_i32, %c0_i32_0 : i32, i32
  }
  func.func @transform_7(%arg0: i32, %arg1: i32) -> (i32, i32, i32) {
    %c0_i32 = arith.constant 0 : i32
    %c0_i32_0 = arith.constant 0 : i32
    return %arg0, %c0_i32, %arg1 : i32, i32, i32
  }
}

</mosaic_0001>

<llo_original>
// kernel: tpu_custom_call.1
$region0: #{tpu_custom_call.1}
  #allocation0 [shape = 'u32[]', space=smem, size = 0x4, offset = 0x4, fixed_abs, tag = 'smem constant byte address 0x4 - core index']
  #allocation1 [shape = 'u32[144,128]{1,0:T(1,128)}', space=vmem, size = 0x12000, scoped, tag = 'internal scratch']
  %s0 = inlined_call_operand.vmem [shape: f32[2,8,128], index: 0, kind: input, shape index: {}]
  %s1 = inlined_call_operand.vmem [shape: f32[32,8], index: 1, kind: input, shape index: {}]
  %s2 = inlined_call_operand.vmem [shape: f32[32,1], index: 2, kind: input, shape index: {}]
  %s3 = inlined_call_operand.vmem [shape: f32[64,32], index: 3, kind: input, shape index: {}]
  %s4 = inlined_call_operand.vmem [shape: f32[64,1], index: 4, kind: input, shape index: {}]
  %s5 = inlined_call_operand.vmem [shape: f32[8,64], index: 5, kind: input, shape index: {}]
  %s6 = inlined_call_operand.vmem [shape: f32[8,1], index: 6, kind: input, shape index: {}]
  %s7 = inlined_call_operand.hbm [shape: f32[2,8,128], index: 7, kind: output, shape index: {}]
  %s8 = sld [smem:[#allocation0]]
  $region61: #{tpu_custom_call.1} parent=0
    _
  %s10 = ssub.s32 1, %s8
  %s11 = scalar_select 0, %s10, %s8
  $region1: #{tpu_custom_call.1} parent=0
    #allocation2 [shape = 'u8[8192]{0}', space=vmem, size = 0x2000, scoped, tag = 'output window, operand 0']
    #allocation3 [shape = 's32[2]{0}', space=sflag, size = 0x8, scoped, tag = 'scoped memory for tpu_custom_call.1']
    %12 = vsyncpa [#allocation3], 0
    %s13 = scalar_lea.sflag [#allocation3], 1
    %14 = vsyncpa %s13, 0
    loop: start=0, step=1, limit=4
    $region2: #{tpu_custom_call.1} parent=1 // loop_pre_header
      _
    $region3: #{tpu_custom_call.1} parent=1 // loop_header
      %s16 = sphi 0, %s20
      %p17 = scmp.ge.s32.totalorder %s16, 4
      %s23 = sphi 0, %s35
      %s24 = sphi 0, %s31
      %s25 = sphi 0, %s23
      %s26 = sphi 0, %s24
      %s27 = sphi 0, %s25
      %s28 = sphi 0, %s26
      %s40 = sphi 0, %s42
      %s43 = sphi 0, %s40
      %s44 = sphi 0, %s43
      %s60 = sphi 0, %s44
      %s64 = sphi 0, %s64
      %s66 = sphi 0, %s64
      %s67 = sphi 0, %s66
      %s81 = sphi 0, %s67
      %s85 = sphi 0, %s85
      %s87 = sphi 0, %s85
      %s88 = sphi 0, %s87
      %s102 = sphi 0, %s88
      %s106 = sphi 0, %s106
      %s108 = sphi 0, %s106
      %s109 = sphi 0, %s108
      %s123 = sphi 0, %s109
      %s127 = sphi 0, %s127
      %s129 = sphi 0, %s127
      %s130 = sphi 0, %s129
      %s144 = sphi 0, %s130
      %s148 = sphi 0, %s148
      %s150 = sphi 0, %s148
      %s151 = sphi 0, %s150
      %s165 = sphi 0, %s151
      %s169 = sphi 0, %s169
      %s171 = sphi 0, %s169
      %s172 = sphi 0, %s171
      %s186 = sphi 0, %s172
      %s194 = sphi 0, %s196
      %s197 = sphi 0, %s194
      %s198 = sphi 0, %s197
      %s214 = sphi 0, %s198
    $region4: #{tpu_custom_call.1} parent=1 // loop_header_branch
      %19 = sbr.rel (%p17) target = $region8
    $region5: #{tpu_custom_call.1} parent=1 // loop_body
      %s21 = ssub.s32 %s16, 1
      %s22 = ssub.s32 %s16, 2
      %s29 = sadd.s32 1, %s24
      %p30 = scmp.ge.s32.totalorder %s29, 1
      %s31 = scalar_select %p30, 0, %s29
      %s32 = sadd.s32 1, %s23
      %s33 = scalar_select %p30, %s32, %s23
      %p34 = scmp.ge.s32.totalorder %s33, 2
      %s35 = scalar_select %p34, 0, %s33
      %s36 = ssub.s32 %s23, %s35
      %s37 = ssub.s32 %s24, %s31
      %s38 = sor.u32 %s36, %s37
      %p39 = scmp.eq.s32.totalorder %s38, 0
      %s41 = sadd.s32 %s40, 1
      %s42 = scalar_select %p39, %s40, %s41
      %p45 = pneg %p39
      %p46 = scmp.eq.s32.totalorder %s16, 1
      %p47 = por %p45, %p46
      %p48 = scmp.ne.s32.totalorder %s40, %s43
      %p49 = scmp.eq.s32.totalorder %s16, 0
      %p50 = por %p48, %p49
      %p51 = scmp.ne.s32.totalorder %s40, %s43
      %p52 = scmp.eq.s32.totalorder %s21, 1
      %p53 = por %p51, %p52
      %p54 = scmp.ne.s32.totalorder %s43, %s44
      %p55 = scmp.eq.s32.totalorder %s21, 0
      %p56 = por %p54, %p55
      %p57 = scmp.ne.s32.totalorder %s43, %s44
      %p58 = scmp.eq.s32.totalorder %s22, 1
      %p59 = por %p57, %p58
      %p61 = scmp.ne.s32.totalorder %s44, %s60
      %p62 = scmp.eq.s32.totalorder %s22, 0
      %p63 = por %p61, %p62
      %s65 = sadd.s32 %s64, 1
      %p68 = scmp.eq.s32.totalorder %s16, 1
      %p69 = scmp.ne.s32.totalorder %s64, %s66
      %p70 = scmp.eq.s32.totalorder %s16, 0
      %p71 = por %p69, %p70
      %p72 = scmp.ne.s32.totalorder %s64, %s66
      %p73 = scmp.eq.s32.totalorder %s21, 1
      %p74 = por %p72, %p73
      %p75 = scmp.ne.s32.totalorder %s66, %s67
      %p76 = scmp.eq.s32.totalorder %s21, 0
      %p77 = por %p75, %p76
      %p78 = scmp.ne.s32.totalorder %s66, %s67
      %p79 = scmp.eq.s32.totalorder %s22, 1
      %p80 = por %p78, %p79
      %p82 = scmp.ne.s32.totalorder %s67, %s81
      %p83 = scmp.eq.s32.totalorder %s22, 0
      %p84 = por %p82, %p83
      %s86 = sadd.s32 %s85, 1
      %p89 = scmp.eq.s32.totalorder %s16, 1
      %p90 = scmp.ne.s32.totalorder %s85, %s87
      %p91 = scmp.eq.s32.totalorder %s16, 0
      %p92 = por %p90, %p91
      %p93 = scmp.ne.s32.totalorder %s85, %s87
      %p94 = scmp.eq.s32.totalorder %s21, 1
      %p95 = por %p93, %p94
      %p96 = scmp.ne.s32.totalorder %s87, %s88
      %p97 = scmp.eq.s32.totalorder %s21, 0
      %p98 = por %p96, %p97
      %p99 = scmp.ne.s32.totalorder %s87, %s88
      %p100 = scmp.eq.s32.totalorder %s22, 1
      %p101 = por %p99, %p100
      %p103 = scmp.ne.s32.totalorder %s88, %s102
      %p104 = scmp.eq.s32.totalorder %s22, 0
      %p105 = por %p103, %p104
      %s107 = sadd.s32 %s106, 1
      %p110 = scmp.eq.s32.totalorder %s16, 1
      %p111 = scmp.ne.s32.totalorder %s106, %s108
      %p112 = scmp.eq.s32.totalorder %s16, 0
      %p113 = por %p111, %p112
      %p114 = scmp.ne.s32.totalorder %s106, %s108
      %p115 = scmp.eq.s32.totalorder %s21, 1
      %p116 = por %p114, %p115
      %p117 = scmp.ne.s32.totalorder %s108, %s109
      %p118 = scmp.eq.s32.totalorder %s21, 0
      %p119 = por %p117, %p118
      %p120 = scmp.ne.s32.totalorder %s108, %s109
      %p121 = scmp.eq.s32.totalorder %s22, 1
      %p122 = por %p120, %p121
      %p124 = scmp.ne.s32.totalorder %s109, %s123
      %p125 = scmp.eq.s32.totalorder %s22, 0
      %p126 = por %p124, %p125
      %s128 = sadd.s32 %s127, 1
      %p131 = scmp.eq.s32.totalorder %s16, 1
      %p132 = scmp.ne.s32.totalorder %s127, %s129
      %p133 = scmp.eq.s32.totalorder %s16, 0
      %p134 = por %p132, %p133
      %p135 = scmp.ne.s32.totalorder %s127, %s129
      %p136 = scmp.eq.s32.totalorder %s21, 1
      %p137 = por %p135, %p136
      %p138 = scmp.ne.s32.totalorder %s129, %s130
      %p139 = scmp.eq.s32.totalorder %s21, 0
      %p140 = por %p138, %p139
      %p141 = scmp.ne.s32.totalorder %s129, %s130
      %p142 = scmp.eq.s32.totalorder %s22, 1
      %p143 = por %p141, %p142
      %p145 = scmp.ne.s32.totalorder %s130, %s144
      %p146 = scmp.eq.s32.totalorder %s22, 0
      %p147 = por %p145, %p146
      %s149 = sadd.s32 %s148, 1
      %p152 = scmp.eq.s32.totalorder %s16, 1
      %p153 = scmp.ne.s32.totalorder %s148, %s150
      %p154 = scmp.eq.s32.totalorder %s16, 0
      %p155 = por %p153, %p154
      %p156 = scmp.ne.s32.totalorder %s148, %s150
      %p157 = scmp.eq.s32.totalorder %s21, 1
      %p158 = por %p156, %p157
      %p159 = scmp.ne.s32.totalorder %s150, %s151
      %p160 = scmp.eq.s32.totalorder %s21, 0
      %p161 = por %p159, %p160
      %p162 = scmp.ne.s32.totalorder %s150, %s151
      %p163 = scmp.eq.s32.totalorder %s22, 1
      %p164 = por %p162, %p163
      %p166 = scmp.ne.s32.totalorder %s151, %s165
      %p167 = scmp.eq.s32.totalorder %s22, 0
      %p168 = por %p166, %p167
      %s170 = sadd.s32 %s169, 1
      %p173 = scmp.eq.s32.totalorder %s16, 1
      %p174 = scmp.ne.s32.totalorder %s169, %s171
      %p175 = scmp.eq.s32.totalorder %s16, 0
      %p176 = por %p174, %p175
      %p177 = scmp.ne.s32.totalorder %s169, %s171
      %p178 = scmp.eq.s32.totalorder %s21, 1
      %p179 = por %p177, %p178
      %p180 = scmp.ne.s32.totalorder %s171, %s172
      %p181 = scmp.eq.s32.totalorder %s21, 0
      %p182 = por %p180, %p181
      %p183 = scmp.ne.s32.totalorder %s171, %s172
      %p184 = scmp.eq.s32.totalorder %s22, 1
      %p185 = por %p183, %p184
      %p187 = scmp.ne.s32.totalorder %s172, %s186
      %p188 = scmp.eq.s32.totalorder %s22, 0
      %p189 = por %p187, %p188
      %s190 = ssub.s32 %s23, %s35
      %s191 = ssub.s32 %s24, %s31
      %s192 = sor.u32 %s190, %s191
      %p193 = scmp.eq.s32.totalorder %s192, 0
      %s195 = sadd.s32 %s194, 1
      %s196 = scalar_select %p193, %s194, %s195
      %p199 = pneg %p193
      %p200 = scmp.eq.s32.totalorder %s16, 1
      %p201 = por %p199, %p200
      %p202 = scmp.ne.s32.totalorder %s194, %s197
      %p203 = scmp.eq.s32.totalorder %s16, 0
      %p204 = por %p202, %p203
      %p205 = scmp.ne.s32.totalorder %s194, %s197
      %p206 = scmp.eq.s32.totalorder %s21, 1
      %p207 = por %p205, %p206
      %p208 = scmp.ne.s32.totalorder %s197, %s198
      %p209 = scmp.eq.s32.totalorder %s21, 0
      %p210 = por %p208, %p209
      %p211 = scmp.ne.s32.totalorder %s197, %s198
      %p212 = scmp.eq.s32.totalorder %s22, 1
      %p213 = por %p211, %p212
      %p215 = scmp.ne.s32.totalorder %s198, %s214
      %p216 = scmp.eq.s32.totalorder %s22, 0
      %p217 = por %p215, %p216
      %p218 = scmp.le.s32.totalorder 1, %s16
      %p219 = scmp.lt.s32.totalorder %s16, 3
      %p220 = pnand %p218, %p219
      %p221 = pneg %p220
      // Predicated region
      $region9: #{tpu_custom_call.1} parent=5 // pred_check
        _
      $region10: #{tpu_custom_call.1} parent=5 // pred_check_branch
        %223 = sbr.rel (%p220) target = $region12
      $region11: #{tpu_custom_call.1} parent=5 // pred_region
        %s224 = ssub.s32 %s16, 1
        // Predicated region
        $region13: #{tpu_custom_call.1} parent=11 // pred_check
          %p225 = pneg %p77
        $region14: #{tpu_custom_call.1} parent=11 // pred_check_branch
          %227 = sbr.rel (%p225) target = $region16
        $region15: #{tpu_custom_call.1} parent=11 // pred_region
          _
        $region16: #{tpu_custom_call.1} parent=11 // pred_fallthru
          _
        // Predicated region
        $region17: #{tpu_custom_call.1} parent=11 // pred_check
          %p228 = pneg %p98
        $region18: #{tpu_custom_call.1} parent=11 // pred_check_branch
          %230 = sbr.rel (%p228) target = $region20
        $region19: #{tpu_custom_call.1} parent=11 // pred_region
          _
        $region20: #{tpu_custom_call.1} parent=11 // pred_fallthru
          _
        // Predicated region
        $region21: #{tpu_custom_call.1} parent=11 // pred_check
          %p231 = pneg %p119
        $region22: #{tpu_custom_call.1} parent=11 // pred_check_branch
          %233 = sbr.rel (%p231) target = $region24
        $region23: #{tpu_custom_call.1} parent=11 // pred_region
          _
        $region24: #{tpu_custom_call.1} parent=11 // pred_fallthru
          _
        // Predicated region
        $region25: #{tpu_custom_call.1} parent=11 // pred_check
          %p234 = pneg %p140
        $region26: #{tpu_custom_call.1} parent=11 // pred_check_branch
          %236 = sbr.rel (%p234) target = $region28
        $region27: #{tpu_custom_call.1} parent=11 // pred_region
          _
        $region28: #{tpu_custom_call.1} parent=11 // pred_fallthru
          _
        // Predicated region
        $region29: #{tpu_custom_call.1} parent=11 // pred_check
          %p237 = pneg %p161
        $region30: #{tpu_custom_call.1} parent=11 // pred_check_branch
          %239 = sbr.rel (%p237) target = $region32
        $region31: #{tpu_custom_call.1} parent=11 // pred_region
          _
        $region32: #{tpu_custom_call.1} parent=11 // pred_fallthru
          _
        // Predicated region
        $region33: #{tpu_custom_call.1} parent=11 // pred_check
          %p240 = pneg %p182
        $region34: #{tpu_custom_call.1} parent=11 // pred_check_branch
          %242 = sbr.rel (%p240) target = $region36
        $region35: #{tpu_custom_call.1} parent=11 // pred_region
          _
        $region36: #{tpu_custom_call.1} parent=11 // pred_fallthru
          _
      $region12: #{tpu_custom_call.1} parent=5 // pred_fallthru
        _
      %p243 = scmp.lt.s32.totalorder %s16, 2
      // Predicated region
      $region37: #{tpu_custom_call.1} parent=5 // pred_check
        %p244 = pneg %p243
      $region38: #{tpu_custom_call.1} parent=5 // pred_check_branch
        %246 = sbr.rel (%p244) target = $region40
      $region39: #{tpu_custom_call.1} parent=5 // pred_region
        // Predicated region
        $region41: #{tpu_custom_call.1} parent=39 // pred_check
          %p247 = pneg %p50
        $region42: #{tpu_custom_call.1} parent=39 // pred_check_branch
          %249 = sbr.rel (%p247) target = $region44
        $region43: #{tpu_custom_call.1} parent=39 // pred_region
          %p250 = scmp.lt.s32.totalorder %s23, 1
          %s251 = scalar_select %p250, %s23, 1
          %p252 = scmp.lt.s32.totalorder %s24, 0
          %s253 = scalar_select %p252, %s24, 0
          %s254 = sadd.s32 %s253, %s251
          %s255 = smul.addr %s254, 8
          %s256 = scalar_lea.vmem %s0, %s255
        $region44: #{tpu_custom_call.1} parent=39 // pred_fallthru
          _
      $region40: #{tpu_custom_call.1} parent=5 // pred_fallthru
        _
      %p257 = scmp.le.s32.totalorder 1, %s16
      %p258 = scmp.lt.s32.totalorder %s16, 3
      %p259 = pnand %p257, %p258
      %p260 = pneg %p259
      // Predicated region
      $region45: #{tpu_custom_call.1} parent=5 // pred_check
        _
      $region46: #{tpu_custom_call.1} parent=5 // pred_check_branch
        %262 = sbr.rel (%p259) target = $region48
      $region47: #{tpu_custom_call.1} parent=5 // pred_region
        %s263 = ssub.s32 %s16, 1
        %p264 = scmp.lt.s32.totalorder %s25, 1
        %s265 = scalar_select %p264, %s25, 1
        %p266 = scmp.lt.s32.totalorder %s26, 0
        %s267 = scalar_select %p266, %s26, 0
        %s268 = sadd.s32 %s267, %s265
        %s269 = smul.addr %s268, 8
        %s270 = scalar_lea.vmem %s0, %s269
        %p271 = pneg %p56
        %p272 = pneg %p53
        %p273 = pneg %p77
        %p274 = pneg %p74
        %p275 = pneg %p98
        %p276 = pneg %p95
        %p277 = pneg %p119
        %p278 = pneg %p116
        %p279 = pneg %p140
        %p280 = pneg %p137
        %p281 = pneg %p161
        %p282 = pneg %p158
        %p283 = pneg %p182
        %p284 = pneg %p179
        %p285 = pneg %p210
        %p286 = pneg %p207
        %s287 = sand.u32 %s197, 1
        %s288 = scalar_lea.sflag [#allocation3], %s287
        %s289 = sand.u32 %s197, 1
        %s290 = smul.addr %s289, 8
        %s291 = scalar_lea.vmem [#allocation2], %s290
        %p292 = scmp.lt.s32.totalorder %s25, 1
        %s293 = scalar_select %p292, %s25, 1
        %p294 = scmp.lt.s32.totalorder %s26, 0
        %s295 = scalar_select %p294, %s26, 0
        %s296 = sadd.s32 %s295, %s293
        %s297 = smul.addr %s296, 8
        %s298 = scalar_lea.vmem %s0, %s297
        %v299 = vld [vmem:[%s298] sm:$0xff]
        %v300 = vld [vmem:[%s1] sm:$0xff]
        %v301 = vld [vmem:[%s1 + $0x8] sm:$0xff]
        %v302 = vld [vmem:[%s1 + $0x10] sm:$0xff]
        %v303 = vld [vmem:[%s1 + $0x18] sm:$0xff]
        %v304 = vld [vmem:[%s2] sm:$0xff]
        %v305 = vld [vmem:[%s2 + $0x8] sm:$0xff]
        %v306 = vld [vmem:[%s2 + $0x10] sm:$0xff]
        %v307 = vld [vmem:[%s2 + $0x18] sm:$0xff]
        %309 = vset.pattern.permute.xlu0 0
        %310 = vperm.xlu0 %309, %v304
        %v311 = vpop.permute.xlu0 %310
        %314 = vset.pattern.permute.xlu0 0
        %315 = vperm.xlu0 %314, %v305
        %v316 = vpop.permute.xlu0 %315
        %319 = vset.pattern.permute.xlu0 0
        %320 = vperm.xlu0 %319, %v306
        %v321 = vpop.permute.xlu0 %320
        %324 = vset.pattern.permute.xlu0 0
        %325 = vperm.xlu0 %324, %v307
        %v326 = vpop.permute.xlu0 %325
        %vm328 = vcmask 64512
        %v330 = vsel %vm328, %v300, 0
        %v333 = vsel %vm328, %v301, 0
        %v336 = vsel %vm328, %v302, 0
        %v339 = vsel %vm328, %v303, 0
        %341 = vmatprep.subr.mxu0 0.0
        %342 = vmatpush1.msra.mxu0 %v299
        %343 = vmatprep.subr.mxu0 0.0
        %344 = vmatpush1.msra.mxu0 0.0
        %345 = vmatprep.subr.mxu0 0.0
        %346 = vmatpush1.msra.mxu0 0.0
        %347 = vmatprep.subr.mxu0 0.0
        %348 = vmatpush1.msra.mxu0 0.0
        %349 = vmatprep.subr.mxu0 0.0
        %350 = vmatpush1.msra.mxu0 0.0
        %351 = vmatprep.subr.mxu0 0.0
        %352 = vmatpush1.msra.mxu0 0.0
        %353 = vmatprep.subr.mxu0 0.0
        %354 = vmatpush1.msra.mxu0 0.0
        %355 = vmatprep.subr.mxu0 0.0
        %356 = vmatpush1.msra.mxu0 0.0
        %357 = vmatprep.subr.mxu0 0.0
        %358 = vmatpush1.msra.mxu0 0.0
        %359 = vmatprep.subr.mxu0 0.0
        %360 = vmatpush1.msra.mxu0 0.0
        %361 = vmatprep.subr.mxu0 0.0
        %362 = vmatpush1.msra.mxu0 0.0
        %363 = vmatprep.subr.mxu0 0.0
        %364 = vmatpush1.msra.mxu0 0.0
        %365 = vmatprep.subr.mxu0 0.0
        %366 = vmatpush1.msra.mxu0 0.0
        %367 = vmatprep.subr.mxu0 0.0
        %368 = vmatpush1.msra.mxu0 0.0
        %369 = vmatprep.subr.mxu0 0.0
        %370 = vmatpush1.msra.mxu0 0.0
        %371 = vmatprep.subr.mxu0 0.0
        %372 = vmatpush1.msra.mxu0 0.0
        %373 = vmatprep.subr.mxu0 0.0
        %374 = vmatpush1.msra.mxu0 0.0
        %375 = vmatprep.subr.mxu0 0.0
        %376 = vmatpush1.msra.mxu0 0.0
        %377 = vmatprep.subr.mxu0 0.0
        %378 = vmatpush1.msra.mxu0 0.0
        %379 = vmatprep.subr.mxu0 0.0
        %380 = vmatpush1.msra.mxu0 0.0
        %381 = vmatprep.subr.mxu0 0.0
        %382 = vmatpush1.msra.mxu0 0.0
        %383 = vmatprep.subr.mxu0 0.0
        %384 = vmatpush1.msra.mxu0 0.0
        %385 = vmatprep.subr.mxu0 0.0
        %386 = vmatpush1.msra.mxu0 0.0
        %387 = vmatprep.subr.mxu0 0.0
        %388 = vmatpush1.msra.mxu0 0.0
        %389 = vmatprep.subr.mxu0 0.0
        %390 = vmatpush1.msra.mxu0 0.0
        %391 = vmatprep.subr.mxu0 0.0
        %392 = vmatpush1.msra.mxu0 0.0
        %393 = vmatprep.subr.mxu0 0.0
        %394 = vmatpush1.msra.mxu0 0.0
        %395 = vmatprep.subr.mxu0 0.0
        %396 = vmatpush1.msra.mxu0 0.0
        %397 = vmatprep.subr.mxu0 0.0
        %398 = vmatpush1.msra.mxu0 0.0
        %399 = vmatprep.subr.mxu0 0.0
        %400 = vmatpush1.msra.mxu0 0.0
        %401 = vmatprep.subr.mxu0 0.0
        %402 = vmatpush1.msra.mxu0 0.0
        %403 = vmatprep.subr.mxu0 0.0
        %404 = vmatpush1.msra.mxu0 0.0
        %405 = vmatprep.mubr.f32.mxu0 0.0
        %406 = vmatmul.mubr.f32.gmra.mrb[0].mxu0 %v330
        %v407 = vpop.f32.mrb[0].mxu0
        %v408 = vadd.f32 %v311, %v407
        %v409 = vpop.f32.mrb[0].mxu0
        %410 = vmatprep.mubr.f32.mxu0 0.0
        %411 = vmatmul.mubr.f32.gmra.mrb[0].mxu0 %v333
        %v412 = vpop.f32.mrb[0].mxu0
        %v413 = vadd.f32 %v316, %v412
        %v414 = vpop.f32.mrb[0].mxu0
        %415 = vmatprep.mubr.f32.mxu0 0.0
        %416 = vmatmul.mubr.f32.gmra.mrb[0].mxu0 %v336
        %v417 = vpop.f32.mrb[0].mxu0
        %v418 = vadd.f32 %v321, %v417
        %v419 = vpop.f32.mrb[0].mxu0
        %420 = vmatprep.mubr.f32.mxu0 0.0
        %421 = vmatmul.mubr.f32.gmra.mrb[0].mxu0 %v339
        %v422 = vpop.f32.mrb[0].mxu0
        %v423 = vadd.f32 %v326, %v422
        %v424 = vpop.f32.mrb[0].mxu0
        %425 = vdwg.mxu0
        %v426 = vmax.f32 %v408, 0.0
        %v427 = vmax.f32 %v413, 0.0
        %v428 = vmax.f32 %v418, 0.0
        %v429 = vmax.f32 %v423, 0.0
        %v430 = vld [vmem:[%s3] sm:$0xff]
        %v431 = vld [vmem:[%s3 + $0x8] sm:$0xff]
        %v432 = vld [vmem:[%s3 + $0x10] sm:$0xff]
        %v433 = vld [vmem:[%s3 + $0x18] sm:$0xff]
        %v434 = vld [vmem:[%s3 + $0x20] sm:$0xff]
        %v435 = vld [vmem:[%s3 + $0x28] sm:$0xff]
        %v436 = vld [vmem:[%s3 + $0x30] sm:$0xff]
        %v437 = vld [vmem:[%s3 + $0x38] sm:$0xff]
        %v438 = vld [vmem:[%s4] sm:$0xff]
        %v439 = vld [vmem:[%s4 + $0x8] sm:$0xff]
        %v440 = vld [vmem:[%s4 + $0x10] sm:$0xff]
        %v441 = vld [vmem:[%s4 + $0x18] sm:$0xff]
        %v442 = vld [vmem:[%s4 + $0x20] sm:$0xff]
        %v443 = vld [vmem:[%s4 + $0x28] sm:$0xff]
        %v444 = vld [vmem:[%s4 + $0x30] sm:$0xff]
        %v445 = vld [vmem:[%s4 + $0x38] sm:$0xff]
        %447 = vset.pattern.permute.xlu0 0
        %448 = vperm.xlu0 %447, %v438
        %v449 = vpop.permute.xlu0 %448
        %452 = vset.pattern.permute.xlu0 0
        %453 = vperm.xlu0 %452, %v439
        %v454 = vpop.permute.xlu0 %453
        %457 = vset.pattern.permute.xlu0 0
        %458 = vperm.xlu0 %457, %v440
        %v459 = vpop.permute.xlu0 %458
        %462 = vset.pattern.permute.xlu0 0
        %463 = vperm.xlu0 %462, %v441
        %v464 = vpop.permute.xlu0 %463
        %467 = vset.pattern.permute.xlu0 0
        %468 = vperm.xlu0 %467, %v442
        %v469 = vpop.permute.xlu0 %468
        %472 = vset.pattern.permute.xlu0 0
        %473 = vperm.xlu0 %472, %v443
        %v474 = vpop.permute.xlu0 %473
        %477 = vset.pattern.permute.xlu0 0
        %478 = vperm.xlu0 %477, %v444
        %v479 = vpop.permute.xlu0 %478
        %482 = vset.pattern.permute.xlu0 0
        %483 = vperm.xlu0 %482, %v445
        %v484 = vpop.permute.xlu0 %483
        %vm486 = vcmask 261120
        %v488 = vsel %vm486, %v430, 0
        %v491 = vsel %vm486, %v431, 0
        %v494 = vsel %vm486, %v432, 0
        %v497 = vsel %vm486, %v433, 0
        %v500 = vsel %vm486, %v434, 0
        %v503 = vsel %vm486, %v435, 0
        %v506 = vsel %vm486, %v436, 0
        %v509 = vsel %vm486, %v437, 0
        %511 = vmatprep.subr.mxu0 0.0
        %512 = vmatpush1.msra.mxu0 %v426
        %513 = vmatprep.subr.mxu0 0.0
        %514 = vmatpush1.msra.mxu0 %v427
        %515 = vmatprep.subr.mxu0 0.0
        %516 = vmatpush1.msra.mxu0 %v428
        %517 = vmatprep.subr.mxu0 0.0
        %518 = vmatpush1.msra.mxu0 %v429
        %519 = vmatprep.subr.mxu0 0.0
        %520 = vmatpush1.msra.mxu0 0.0
        %521 = vmatprep.subr.mxu0 0.0
        %522 = vmatpush1.msra.mxu0 0.0
        %523 = vmatprep.subr.mxu0 0.0
        %524 = vmatpush1.msra.mxu0 0.0
        %525 = vmatprep.subr.mxu0 0.0
        %526 = vmatpush1.msra.mxu0 0.0
        %527 = vmatprep.subr.mxu0 0.0
        %528 = vmatpush1.msra.mxu0 0.0
        %529 = vmatprep.subr.mxu0 0.0
        %530 = vmatpush1.msra.mxu0 0.0
        %531 = vmatprep.subr.mxu0 0.0
        %532 = vmatpush1.msra.mxu0 0.0
        %533 = vmatprep.subr.mxu0 0.0
        %534 = vmatpush1.msra.mxu0 0.0
        %535 = vmatprep.subr.mxu0 0.0
        %536 = vmatpush1.msra.mxu0 0.0
        %537 = vmatprep.subr.mxu0 0.0
        %538 = vmatpush1.msra.mxu0 0.0
        %539 = vmatprep.subr.mxu0 0.0
        %540 = vmatpush1.msra.mxu0 0.0
        %541 = vmatprep.subr.mxu0 0.0
        %542 = vmatpush1.msra.mxu0 0.0
        %543 = vmatprep.subr.mxu0 0.0
        %544 = vmatpush1.msra.mxu0 0.0
        %545 = vmatprep.subr.mxu0 0.0
        %546 = vmatpush1.msra.mxu0 0.0
        %547 = vmatprep.subr.mxu0 0.0
        %548 = vmatpush1.msra.mxu0 0.0
        %549 = vmatprep.subr.mxu0 0.0
        %550 = vmatpush1.msra.mxu0 0.0
        %551 = vmatprep.subr.mxu0 0.0
        %552 = vmatpush1.msra.mxu0 0.0
        %553 = vmatprep.subr.mxu0 0.0
        %554 = vmatpush1.msra.mxu0 0.0
        %555 = vmatprep.subr.mxu0 0.0
        %556 = vmatpush1.msra.mxu0 0.0
        %557 = vmatprep.subr.mxu0 0.0
        %558 = vmatpush1.msra.mxu0 0.0
        %559 = vmatprep.subr.mxu0 0.0
        %560 = vmatpush1.msra.mxu0 0.0
        %561 = vmatprep.subr.mxu0 0.0
        %562 = vmatpush1.msra.mxu0 0.0
        %563 = vmatprep.subr.mxu0 0.0
        %564 = vmatpush1.msra.mxu0 0.0
        %565 = vmatprep.subr.mxu0 0.0
        %566 = vmatpush1.msra.mxu0 0.0
        %567 = vmatprep.subr.mxu0 0.0
        %568 = vmatpush1.msra.mxu0 0.0
        %569 = vmatprep.subr.mxu0 0.0
        %570 = vmatpush1.msra.mxu0 0.0
        %571 = vmatprep.subr.mxu0 0.0
        %572 = vmatpush1.msra.mxu0 0.0
        %573 = vmatprep.subr.mxu0 0.0
        %574 = vmatpush1.msra.mxu0 0.0
        %575 = vmatprep.mubr.f32.mxu0 0.0
        %576 = vmatmul.mubr.f32.gmra.mrb[0].mxu0 %v488
        %v577 = vpop.f32.mrb[0].mxu0
        %v578 = vadd.f32 %v449, %v577
        %v579 = vpop.f32.mrb[0].mxu0
        %580 = vmatprep.mubr.f32.mxu0 0.0
        %581 = vmatmul.mubr.f32.gmra.mrb[0].mxu0 %v491
        %v582 = vpop.f32.mrb[0].mxu0
        %v583 = vadd.f32 %v454, %v582
        %v584 = vpop.f32.mrb[0].mxu0
        %585 = vmatprep.mubr.f32.mxu0 0.0
        %586 = vmatmul.mubr.f32.gmra.mrb[0].mxu0 %v494
        %v587 = vpop.f32.mrb[0].mxu0
        %v588 = vadd.f32 %v459, %v587
        %v589 = vpop.f32.mrb[0].mxu0
        %590 = vmatprep.mubr.f32.mxu0 0.0
        %591 = vmatmul.mubr.f32.gmra.mrb[0].mxu0 %v497
        %v592 = vpop.f32.mrb[0].mxu0
        %v593 = vadd.f32 %v464, %v592
        %v594 = vpop.f32.mrb[0].mxu0
        %595 = vmatprep.mubr.f32.mxu0 0.0
        %596 = vmatmul.mubr.f32.gmra.mrb[0].mxu0 %v500
        %v597 = vpop.f32.mrb[0].mxu0
        %v598 = vadd.f32 %v469, %v597
        %v599 = vpop.f32.mrb[0].mxu0
        %600 = vmatprep.mubr.f32.mxu0 0.0
        %601 = vmatmul.mubr.f32.gmra.mrb[0].mxu0 %v503
        %v602 = vpop.f32.mrb[0].mxu0
        %v603 = vadd.f32 %v474, %v602
        %v604 = vpop.f32.mrb[0].mxu0
        %605 = vmatprep.mubr.f32.mxu0 0.0
        %606 = vmatmul.mubr.f32.gmra.mrb[0].mxu0 %v506
        %v607 = vpop.f32.mrb[0].mxu0
        %v608 = vadd.f32 %v479, %v607
        %v609 = vpop.f32.mrb[0].mxu0
        %610 = vmatprep.mubr.f32.mxu0 0.0
        %611 = vmatmul.mubr.f32.gmra.mrb[0].mxu0 %v509
        %v612 = vpop.f32.mrb[0].mxu0
        %v613 = vadd.f32 %v484, %v612
        %v614 = vpop.f32.mrb[0].mxu0
        %615 = vdwg.mxu0
        %v616 = vmax.f32 %v578, 0.0
        %v617 = vmax.f32 %v583, 0.0
        %v618 = vmax.f32 %v588, 0.0
        %v619 = vmax.f32 %v593, 0.0
        %v620 = vmax.f32 %v598, 0.0
        %v621 = vmax.f32 %v603, 0.0
        %v622 = vmax.f32 %v608, 0.0
        %v623 = vmax.f32 %v613, 0.0
        %v624 = vld [vmem:[%s5] sm:$0xff]
        %v625 = vld [vmem:[%s6] sm:$0xff]
        %627 = vset.pattern.permute.xlu0 0
        %628 = vperm.xlu0 %627, %v625
        %v629 = vpop.permute.xlu0 %628
        %vm631 = vcmask 523264
        %v633 = vsel %vm631, %v624, 0
        %635 = vmatprep.subr.mxu0 0.0
        %636 = vmatpush1.msra.mxu0 %v616
        %637 = vmatprep.subr.mxu0 0.0
        %638 = vmatpush1.msra.mxu0 %v617
        %639 = vmatprep.subr.mxu0 0.0
        %640 = vmatpush1.msra.mxu0 %v618
        %641 = vmatprep.subr.mxu0 0.0
        %642 = vmatpush1.msra.mxu0 %v619
        %643 = vmatprep.subr.mxu0 0.0
        %644 = vmatpush1.msra.mxu0 %v620
        %645 = vmatprep.subr.mxu0 0.0
        %646 = vmatpush1.msra.mxu0 %v621
        %647 = vmatprep.subr.mxu0 0.0
        %648 = vmatpush1.msra.mxu0 %v622
        %649 = vmatprep.subr.mxu0 0.0
        %650 = vmatpush1.msra.mxu0 %v623
        %651 = vmatprep.subr.mxu0 0.0
        %652 = vmatpush1.msra.mxu0 0.0
        %653 = vmatprep.subr.mxu0 0.0
        %654 = vmatpush1.msra.mxu0 0.0
        %655 = vmatprep.subr.mxu0 0.0
        %656 = vmatpush1.msra.mxu0 0.0
        %657 = vmatprep.subr.mxu0 0.0
        %658 = vmatpush1.msra.mxu0 0.0
        %659 = vmatprep.subr.mxu0 0.0
        %660 = vmatpush1.msra.mxu0 0.0
        %661 = vmatprep.subr.mxu0 0.0
        %662 = vmatpush1.msra.mxu0 0.0
        %663 = vmatprep.subr.mxu0 0.0
        %664 = vmatpush1.msra.mxu0 0.0
        %665 = vmatprep.subr.mxu0 0.0
        %666 = vmatpush1.msra.mxu0 0.0
        %667 = vmatprep.subr.mxu0 0.0
        %668 = vmatpush1.msra.mxu0 0.0
        %669 = vmatprep.subr.mxu0 0.0
        %670 = vmatpush1.msra.mxu0 0.0
        %671 = vmatprep.subr.mxu0 0.0
        %672 = vmatpush1.msra.mxu0 0.0
        %673 = vmatprep.subr.mxu0 0.0
        %674 = vmatpush1.msra.mxu0 0.0
        %675 = vmatprep.subr.mxu0 0.0
        %676 = vmatpush1.msra.mxu0 0.0
        %677 = vmatprep.subr.mxu0 0.0
        %678 = vmatpush1.msra.mxu0 0.0
        %679 = vmatprep.subr.mxu0 0.0
        %680 = vmatpush1.msra.mxu0 0.0
        %681 = vmatprep.subr.mxu0 0.0
        %682 = vmatpush1.msra.mxu0 0.0
        %683 = vmatprep.subr.mxu0 0.0
        %684 = vmatpush1.msra.mxu0 0.0
        %685 = vmatprep.subr.mxu0 0.0
        %686 = vmatpush1.msra.mxu0 0.0
        %687 = vmatprep.subr.mxu0 0.0
        %688 = vmatpush1.msra.mxu0 0.0
        %689 = vmatprep.subr.mxu0 0.0
        %690 = vmatpush1.msra.mxu0 0.0
        %691 = vmatprep.subr.mxu0 0.0
        %692 = vmatpush1.msra.mxu0 0.0
        %693 = vmatprep.subr.mxu0 0.0
        %694 = vmatpush1.msra.mxu0 0.0
        %695 = vmatprep.subr.mxu0 0.0
        %696 = vmatpush1.msra.mxu0 0.0
        %697 = vmatprep.subr.mxu0 0.0
        %698 = vmatpush1.msra.mxu0 0.0
        %699 = vmatprep.mubr.f32.mxu0 0.0
        %700 = vmatmul.mubr.f32.gmra.mrb[0].mxu0 %v633
        %v701 = vpop.f32.mrb[0].mxu0
        %v702 = vadd.f32 %v629, %v701
        %v703 = vpop.f32.mrb[0].mxu0
        %704 = vdwg.mxu0
        %705 = vst [vmem:[%s291] sm:$0xff] %v702
        %s706 = sand.u32 %s197, 1
        %s707 = scalar_lea.sflag [#allocation3], %s706
        %s708 = sand.u32 %s197, 1
        %s709 = smul.addr %s708, 8
        %s710 = scalar_lea.vmem [#allocation2], %s709
        // Predicated region
        $region49: #{tpu_custom_call.1} parent=47 // pred_check
          %p711 = pneg %p207
        $region50: #{tpu_custom_call.1} parent=47 // pred_check_branch
          %713 = sbr.rel (%p711) target = $region52
        $region51: #{tpu_custom_call.1} parent=47 // pred_region
          %s715 = ssub.s32 128, 128
          %716 = vsyncadd %s707, %s715
          %s717 = sadd.s32 %s26, %s25
          %s718 = smul.addr %s717, 128
          %s719 = scalar_lea.hbm %s7, %s718
          %s721 = sshll.u32 %s710, 4
          %s722 = int_to_ptr.vmem [resolvable:$true] %s721
          %724 = dma.vmem_to_hbm [thread:$0]  %s722, 128, %s719, %s707
        $region52: #{tpu_custom_call.1} parent=47 // pred_fallthru
          _
      $region48: #{tpu_custom_call.1} parent=5 // pred_fallthru
        _
      %p725 = scmp.le.s32.totalorder 2, %s16
      // Predicated region
      $region53: #{tpu_custom_call.1} parent=5 // pred_check
        %p726 = pneg %p725
      $region54: #{tpu_custom_call.1} parent=5 // pred_check_branch
        %728 = sbr.rel (%p726) target = $region56
      $region55: #{tpu_custom_call.1} parent=5 // pred_region
        %s729 = ssub.s32 %s16, 2
        // Predicated region
        $region57: #{tpu_custom_call.1} parent=55 // pred_check
          %p730 = pneg %p213
        $region58: #{tpu_custom_call.1} parent=55 // pred_check_branch
          %732 = sbr.rel (%p730) target = $region60
        $region59: #{tpu_custom_call.1} parent=55 // pred_region
          %s733 = sand.u32 %s198, 1
          %s734 = scalar_lea.sflag [#allocation3], %s733
          %s735 = sand.u32 %s198, 1
          %s736 = smul.addr %s735, 8
          %s737 = scalar_lea.vmem [#allocation2], %s736
          %738 = dma.done %s734, 128
        $region60: #{tpu_custom_call.1} parent=55 // pred_fallthru
          _
      $region56: #{tpu_custom_call.1} parent=5 // pred_fallthru
        _
    $region6: #{tpu_custom_call.1} parent=1 // loop_footer
      %s20 = sadd.s32 1, %s16
    $region7: #{tpu_custom_call.1} parent=1 // loop_footer_branch
      %15 = sbr.rel target = $region3
    $region8: #{tpu_custom_call.1} parent=1 // loop_exit
      _
    %739 = vsyncpa [#allocation3], 1
    %s740 = scalar_lea.sflag [#allocation3], 1
    %741 = vsyncpa %s740, 1

</llo_original>
